<compile_context>
chip_gen: v6e
topology: v6e:2x2x1
jax: 0.10.0
libtpu: 0.0.40
codegen_flags: <defaults>
</compile_context>

<pallas_src>
import jax
import jax.numpy as jnp
from jax import lax
from jax.experimental import pallas as pl
from jax.experimental.pallas import tpu as pltpu

EPS = 1e-5  # PyTorch BatchNorm1d default eps


def _make_kernel(N, Lout, Cin, P, projection):
    M = N * Lout
    inv_cnt = 1.0 / float(M)

    def _bn(x, g, b):
        # single-pass batch statistics (biased variance, training mode)
        s = jnp.sum(x, axis=1, keepdims=True)
        q = jnp.sum(x * x, axis=1, keepdims=True)
        mu = s * inv_cnt
        var = jnp.maximum(q * inv_cnt - mu * mu, 0.0)
        return (x - mu) * (lax.rsqrt(var + EPS) * g) + b

    def kernel(x3_ref, w1_ref, g1_ref, b1_ref, w2_ref, g2_ref, b2_ref,
               mask_ref, *rest):
        if projection:
            wsc_ref, gsc_ref, bsc_ref, out_ref, hpad_ref = rest
        else:
            out_ref, hpad_ref = rest

        x3 = x3_ref[...]                                            # (3*Cin, M)

        # ---- conv1: all 3 taps fused into ONE (P,3Cin) x (3Cin,M) matmul ----
        c1 = jnp.dot(w1_ref[...], x3, preferred_element_type=jnp.float32)

        # ---- BN1 + ReLU (stays in vregs) ----
        h = jnp.maximum(_bn(c1, g1_ref[...], b1_ref[...]), 0.0)     # (P, M)

        # ---- build +/-1 shifted views of h for conv2 ----
        # Stage h once in a (P, M+2) buffer; only the 2 pad columns are zeroed.
        hpad_ref[:, 1:M + 1] = h
        zcol = jnp.zeros((P, 1), jnp.float32)
        hpad_ref[:, 0:1] = zcol
        hpad_ref[:, M + 1:M + 2] = zcol
        # Per-lane masks zero neighbours that would leak across batch elements
        # (column layout is batch-major: col = n*Lout + l).
        h_prev = hpad_ref[:, 0:M] * mask_ref[0:1, :]
        h_next = hpad_ref[:, 2:M + 2] * mask_ref[1:2, :]

        # ---- conv2: one full-slab matmul per tap ----
        c2 = (jnp.dot(w2_ref[1], h, preferred_element_type=jnp.float32)
              + jnp.dot(w2_ref[0], h_prev, preferred_element_type=jnp.float32)
              + jnp.dot(w2_ref[2], h_next, preferred_element_type=jnp.float32))

        # ---- BN2, shortcut branch, residual add, final ReLU ----
        o = _bn(c2, g2_ref[...], b2_ref[...])

        if projection:
            # 1x1 strided conv: its input is exactly the (already strided)
            # centre-tap block of x3 (rows 0:Cin, sublane-aligned slice).
            sc = jnp.dot(wsc_ref[...], x3[0:Cin, :],
                         preferred_element_type=jnp.float32)
            sc = _bn(sc, gsc_ref[...], bsc_ref[...])
        else:
            sc = x3[0:Cin, :]        # identity shortcut (Cin == P, stride == 1)

        out_ref[...] = jnp.maximum(o + sc, 0.0)     # lane-dense (P, N*Lout) store

    return kernel


def basic_block_forward(x_ncl, params, stride):
    """Forward pass matching deepsignal2 BasicBlock.forward (training-mode BN)."""
    N, Cin, L = x_ncl.shape
    P = params["w1"].shape[0]                    # planes; PyTorch w1: (P, Cin, 3)
    projection = (stride != 1) or (Cin != P)
    Lout = (L - 1) // stride + 1
    M = N * Lout

    # ---- wrapper-side layout plumbing (plain JAX) ----
    x = x_ncl.astype(jnp.float32)
    x_pad = jnp.pad(x, ((0, 0), (0, 0), (1, 1)))                  # (N, Cin, L+2)

    def tap(k):                                                   # strided tap view
        sl = x_pad[:, :, k:k + (Lout - 1) * stride + 1:stride]    # (N, Cin, Lout)
        return jnp.transpose(sl, (1, 0, 2)).reshape(Cin, M)       # (Cin, M)

    # centre tap first: it doubles as the (strided) shortcut input.
    x3 = jnp.concatenate([tap(1), tap(0), tap(2)], axis=0)        # (3*Cin, M)

    w1 = params["w1"].astype(jnp.float32)                         # (P, Cin, 3)
    w1cat = jnp.concatenate([w1[:, :, 1], w1[:, :, 0], w1[:, :, 2]], axis=1)  # (P, 3Cin)
    w2 = jnp.transpose(params["w2"].astype(jnp.float32), (2, 0, 1))           # (3, P, P)
    g1 = params["bn1_gamma"].reshape(P, 1).astype(jnp.float32)
    b1 = params["bn1_beta"].reshape(P, 1).astype(jnp.float32)
    g2 = params["bn2_gamma"].reshape(P, 1).astype(jnp.float32)
    b2 = params["bn2_beta"].reshape(P, 1).astype(jnp.float32)

    # batch-boundary masks for conv2's +/-1 neighbours (col = n*Lout + l).
    lpos = jnp.arange(M, dtype=jnp.int32) % Lout
    masks = jnp.stack([(lpos != 0), (lpos != Lout - 1)]).astype(jnp.float32)  # (2, M)

    args = [x3, w1cat, g1, b1, w2, g2, b2, masks]
    if projection:
        wsc = params["wsc"][:, :, 0].astype(jnp.float32)                      # (P, Cin)
        gsc = params["bnsc_gamma"].reshape(P, 1).astype(jnp.float32)
        bsc = params["bnsc_beta"].reshape(P, 1).astype(jnp.float32)
        args += [wsc, gsc, bsc]          # no dummy DMAs in the identity-shortcut case

    kernel = _make_kernel(N, Lout, Cin, P, projection)
    vmem = pl.BlockSpec(memory_space=pltpu.MemorySpace.VMEM)

    # TODO(synk): for large N*L, tile the position (lane) axis with a grid +
    # BlockSpec pipelining, accumulate BN partial sums across tiles (multi-phase
    # or two-kernel stats/normalize), and mark the tiled axis "parallel" so
    # v7x's second TensorCore is used.  At these shapes the whole working set is
    # a few KiB, so a single resident invocation is optimal.
    out = pl.pallas_call(
        kernel,
        out_shape=jax.ShapeDtypeStruct((P, M), jnp.float32),
        in_specs=[vmem] * len(args),
        out_specs=vmem,
        scratch_shapes=[pltpu.VMEM((P, M + 2), jnp.float32)],
        compiler_params=pltpu.CompilerParams(vmem_limit_bytes=32 * 1024 * 1024),
    )(*args)

    # back to PyTorch NCL: (N, planes, Lout)
    return jnp.transpose(out.reshape(P, N, Lout), (1, 0, 2))


def basic_block_reference(x, params, stride):
    """Independent plain-JAX reference (matches PyTorch BasicBlock.forward)."""
    hp = lax.Precision.HIGHEST

    def conv(x_, w, s, pad):
        return lax.conv_general_dilated(
            x_, w, window_strides=(s,), padding=[(pad, pad)],
            dimension_numbers=("NCH", "OIH", "NCH"), precision=hp)

    def bn(x_, g, b):
        mu = jnp.mean(x_, axis=(0, 2), keepdims=True)
        var = jnp.mean((x_ - mu) ** 2, axis=(0, 2), keepdims=True)
        return (x_ - mu) * lax.rsqrt(var + EPS) * g.reshape(1, -1, 1) + b.reshape(1, -1, 1)

    h = jax.nn.relu(bn(conv(x, params["w1"], stride, 1),
                       params["bn1_gamma"], params["bn1_beta"]))
    o = bn(conv(h, params["w2"], 1, 1), params["bn2_gamma"], params["bn2_beta"])
    if "wsc" in params:
        sc = bn(conv(x, params["wsc"], stride, 0),
                params["bnsc_gamma"], params["bnsc_beta"])
    else:
        sc = x
    return jax.nn.relu(o + sc)


def init_params(key, in_planes, planes, stride):
    """Deterministic synthetic parameters, PyTorch-shaped (Conv1d: (Cout, Cin, k))."""
    ks = jax.random.split(key, 8)

    def conv_init(k, shape):
        fan_in = shape[1] * shape[2]
        bound = 1.0 / (fan_in ** 0.5)
        return jax.random.uniform(k, shape, jnp.float32, -bound, bound)

    params = {
        "w1": conv_init(ks[0], (planes, in_planes, 3)),
        "w2": conv_init(ks[1], (planes, planes, 3)),
        "bn1_gamma": 1.0 + 0.1 * jax.random.normal(ks[2], (planes,), jnp.float32),
        "bn1_beta": 0.1 * jax.random.normal(ks[3], (planes,), jnp.float32),
        "bn2_gamma": 1.0 + 0.1 * jax.random.normal(ks[4], (planes,), jnp.float32),
        "bn2_beta": 0.1 * jax.random.normal(ks[5], (planes,), jnp.float32),
    }
    if stride != 1 or in_planes != planes:
        params["wsc"] = conv_init(ks[6], (planes, in_planes, 1))
        params["bnsc_gamma"] = 1.0 + 0.1 * jax.random.normal(ks[7], (planes,), jnp.float32)
        params["bnsc_beta"] = jnp.zeros((planes,), jnp.float32)
    return params


if __name__ == "__main__":
    key = jax.random.PRNGKey(0)
    kx, kp1, kp2 = jax.random.split(key, 3)

    # Case 1: projection shortcut (stride=2, channel expansion 4 -> 8)
    N, Cin, L, planes, stride = 2, 4, 16, 8, 2
    x = jax.random.normal(kx, (N, Cin, L), jnp.float32)
    params = init_params(kp1, Cin, planes, stride)
    y = jax.block_until_ready(basic_block_forward(x, params, stride))
    y_ref = basic_block_reference(x, params, stride)
    assert y.shape == (N, planes, (L - 1) // stride + 1)
    assert bool(jnp.all(jnp.isfinite(y)))
    assert float(jnp.max(jnp.abs(y - y_ref))) < 5e-2

    # Case 2: identity shortcut (stride=1, in_planes == planes)
    x2 = jax.random.normal(kx, (N, planes, L), jnp.float32)
    params2 = init_params(kp2, planes, planes, 1)
    y2 = jax.block_until_ready(basic_block_forward(x2, params2, 1))
    y2_ref = basic_block_reference(x2, params2, 1)
    assert y2.shape == (N, planes, L)
    assert bool(jnp.all(jnp.isfinite(y2)))
    assert float(jnp.max(jnp.abs(y2 - y2_ref))) < 5e-2

    print("KERNEL_OK")
</pallas_src>

<mosaic_0001>
module attributes {stable_mosaic.version = 11 : i64} {
  func.func @kernel(%arg0: memref<12x16xf32, #tpu.memory_space<vmem>>, %arg1: memref<8x12xf32, #tpu.memory_space<vmem>>, %arg2: memref<8x1xf32, #tpu.memory_space<vmem>>, %arg3: memref<8x1xf32, #tpu.memory_space<vmem>>, %arg4: memref<3x8x8xf32, #tpu.memory_space<vmem>>, %arg5: memref<8x1xf32, #tpu.memory_space<vmem>>, %arg6: memref<8x1xf32, #tpu.memory_space<vmem>>, %arg7: memref<2x16xf32, #tpu.memory_space<vmem>>, %arg8: memref<8x4xf32, #tpu.memory_space<vmem>>, %arg9: memref<8x1xf32, #tpu.memory_space<vmem>>, %arg10: memref<8x1xf32, #tpu.memory_space<vmem>>, %arg11: memref<8x16xf32, #tpu.memory_space<vmem>>, %arg12: memref<8x18xf32, #tpu.memory_space<vmem>>) attributes {dimension_semantics = [], scalar_prefetch = 0 : i64, scratch_operands = 1 : i64, tpu.core_type = #tpu.core_type<tc>} {
    %c0 = arith.constant 0 : index
    %c0_0 = arith.constant 0 : index
    %0 = vector.load %arg0[%c0, %c0_0] : memref<12x16xf32, #tpu.memory_space<vmem>>, vector<12x16xf32>
    %c0_1 = arith.constant 0 : index
    %c0_2 = arith.constant 0 : index
    %1 = vector.load %arg1[%c0_1, %c0_2] : memref<8x12xf32, #tpu.memory_space<vmem>>, vector<8x12xf32>
    %cst = arith.constant dense<0.000000e+00> : vector<8x16xf32>
    %2 = tpu.matmul %1, %0, %cst {dimension_numbers = #tpu.dot_dimension_numbers<[1], [0], [0], [1], [0, 0, 1, 1], [], []>} : vector<8x12xf32>, vector<12x16xf32>, vector<8x16xf32> -> vector<8x16xf32>
    %c0_3 = arith.constant 0 : index
    %c0_4 = arith.constant 0 : index
    %3 = vector.load %arg2[%c0_3, %c0_4] : memref<8x1xf32, #tpu.memory_space<vmem>>, vector<8x1xf32>
    %c0_5 = arith.constant 0 : index
    %c0_6 = arith.constant 0 : index
    %4 = vector.load %arg3[%c0_5, %c0_6] : memref<8x1xf32, #tpu.memory_space<vmem>>, vector<8x1xf32>
    %cst_7 = arith.constant dense<0.000000e+00> : vector<8xf32>
    %5 = vector.multi_reduction <add>, %2, %cst_7 [1] : vector<8x16xf32> to vector<8xf32>
    %6 = vector.shape_cast %5 : vector<8xf32> to vector<8x1xf32>
    %7 = arith.mulf %2, %2 : vector<8x16xf32>
    %cst_8 = arith.constant dense<0.000000e+00> : vector<8xf32>
    %8 = vector.multi_reduction <add>, %7, %cst_8 [1] : vector<8x16xf32> to vector<8xf32>
    %9 = vector.shape_cast %8 : vector<8xf32> to vector<8x1xf32>
    %cst_9 = arith.constant 6.250000e-02 : f32
    %10 = vector.broadcast %cst_9 : f32 to vector<8x1xf32>
    %11 = arith.mulf %6, %10 : vector<8x1xf32>
    %cst_10 = arith.constant 6.250000e-02 : f32
    %12 = vector.broadcast %cst_10 : f32 to vector<8x1xf32>
    %13 = arith.mulf %9, %12 : vector<8x1xf32>
    %14 = arith.mulf %11, %11 : vector<8x1xf32>
    %15 = arith.subf %13, %14 : vector<8x1xf32>
    %cst_11 = arith.constant 0.000000e+00 : f32
    %16 = vector.broadcast %cst_11 : f32 to vector<8x1xf32>
    %17 = arith.maximumf %15, %16 : vector<8x1xf32>
    %18 = vector.broadcast %11 : vector<8x1xf32> to vector<8x16xf32>
    %19 = arith.subf %2, %18 : vector<8x16xf32>
    %cst_12 = arith.constant 9.99999974E-6 : f32
    %20 = vector.broadcast %cst_12 : f32 to vector<8x1xf32>
    %21 = arith.addf %17, %20 : vector<8x1xf32>
    %22 = math.rsqrt %21 : vector<8x1xf32>
    %23 = arith.mulf %22, %3 : vector<8x1xf32>
    %24 = vector.broadcast %23 : vector<8x1xf32> to vector<8x16xf32>
    %25 = arith.mulf %19, %24 : vector<8x16xf32>
    %26 = vector.broadcast %4 : vector<8x1xf32> to vector<8x16xf32>
    %27 = arith.addf %25, %26 : vector<8x16xf32>
    %cst_13 = arith.constant 0.000000e+00 : f32
    %28 = vector.broadcast %cst_13 : f32 to vector<8x16xf32>
    %29 = arith.maximumf %27, %28 : vector<8x16xf32>
    %c0_14 = arith.constant 0 : index
    %c1 = arith.constant 1 : index
    %30 = vector.load %arg12[%c0_14, %c1] : memref<8x18xf32, #tpu.memory_space<vmem>>, vector<8x16xf32>
    tpu.vector_store %arg12[%c0_14, %c1], %29 {strides = array<i32>} : memref<8x18xf32, #tpu.memory_space<vmem>>, vector<8x16xf32>,
    %cst_15 = arith.constant 0.000000e+00 : f32
    %31 = vector.broadcast %cst_15 : f32 to vector<8x1xf32>
    %c0_16 = arith.constant 0 : index
    %c0_17 = arith.constant 0 : index
    %32 = vector.load %arg12[%c0_16, %c0_17] : memref<8x18xf32, #tpu.memory_space<vmem>>, vector<8x1xf32>
    tpu.vector_store %arg12[%c0_16, %c0_17], %31 {strides = array<i32>} : memref<8x18xf32, #tpu.memory_space<vmem>>, vector<8x1xf32>,
    %c0_18 = arith.constant 0 : index
    %c17 = arith.constant 17 : index
    %33 = vector.load %arg12[%c0_18, %c17] : memref<8x18xf32, #tpu.memory_space<vmem>>, vector<8x1xf32>
    tpu.vector_store %arg12[%c0_18, %c17], %31 {strides = array<i32>} : memref<8x18xf32, #tpu.memory_space<vmem>>, vector<8x1xf32>,
    %c0_19 = arith.constant 0 : index
    %c0_20 = arith.constant 0 : index
    %34 = vector.load %arg12[%c0_19, %c0_20] : memref<8x18xf32, #tpu.memory_space<vmem>>, vector<8x16xf32>
    %c0_21 = arith.constant 0 : index
    %c0_22 = arith.constant 0 : index
    %35 = vector.load %arg7[%c0_21, %c0_22] : memref<2x16xf32, #tpu.memory_space<vmem>>, vector<1x16xf32>
    %36 = vector.broadcast %35 : vector<1x16xf32> to vector<8x16xf32>
    %37 = arith.mulf %34, %36 : vector<8x16xf32>
    %c0_23 = arith.constant 0 : index
    %c2 = arith.constant 2 : index
    %38 = vector.load %arg12[%c0_23, %c2] : memref<8x18xf32, #tpu.memory_space<vmem>>, vector<8x16xf32>
    %c1_24 = arith.constant 1 : index
    %c0_25 = arith.constant 0 : index
    %39 = vector.load %arg7[%c1_24, %c0_25] : memref<2x16xf32, #tpu.memory_space<vmem>>, vector<1x16xf32>
    %40 = vector.broadcast %39 : vector<1x16xf32> to vector<8x16xf32>
    %41 = arith.mulf %38, %40 : vector<8x16xf32>
    %c1_26 = arith.constant 1 : index
    %c0_27 = arith.constant 0 : index
    %c0_28 = arith.constant 0 : index
    %42 = vector.load %arg4[%c1_26, %c0_27, %c0_28] : memref<3x8x8xf32, #tpu.memory_space<vmem>>, vector<1x8x8xf32>
    %43 = vector.shape_cast %42 : vector<1x8x8xf32> to vector<8x8xf32>
    %cst_29 = arith.constant dense<0.000000e+00> : vector<8x16xf32>
    %44 = tpu.matmul %43, %29, %cst_29 {dimension_numbers = #tpu.dot_dimension_numbers<[1], [0], [0], [1], [0, 0, 1, 1], [], []>} : vector<8x8xf32>, vector<8x16xf32>, vector<8x16xf32> -> vector<8x16xf32>
    %c0_30 = arith.constant 0 : index
    %c0_31 = arith.constant 0 : index
    %c0_32 = arith.constant 0 : index
    %45 = vector.load %arg4[%c0_30, %c0_31, %c0_32] : memref<3x8x8xf32, #tpu.memory_space<vmem>>, vector<1x8x8xf32>
    %46 = vector.shape_cast %45 : vector<1x8x8xf32> to vector<8x8xf32>
    %cst_33 = arith.constant dense<0.000000e+00> : vector<8x16xf32>
    %47 = tpu.matmul %46, %37, %cst_33 {dimension_numbers = #tpu.dot_dimension_numbers<[1], [0], [0], [1], [0, 0, 1, 1], [], []>} : vector<8x8xf32>, vector<8x16xf32>, vector<8x16xf32> -> vector<8x16xf32>
    %48 = arith.addf %44, %47 : vector<8x16xf32>
    %c2_34 = arith.constant 2 : index
    %c0_35 = arith.constant 0 : index
    %c0_36 = arith.constant 0 : index
    %49 = vector.load %arg4[%c2_34, %c0_35, %c0_36] : memref<3x8x8xf32, #tpu.memory_space<vmem>>, vector<1x8x8xf32>
    %50 = vector.shape_cast %49 : vector<1x8x8xf32> to vector<8x8xf32>
    %cst_37 = arith.constant dense<0.000000e+00> : vector<8x16xf32>
    %51 = tpu.matmul %50, %41, %cst_37 {dimension_numbers = #tpu.dot_dimension_numbers<[1], [0], [0], [1], [0, 0, 1, 1], [], []>} : vector<8x8xf32>, vector<8x16xf32>, vector<8x16xf32> -> vector<8x16xf32>
    %52 = arith.addf %48, %51 : vector<8x16xf32>
    %c0_38 = arith.constant 0 : index
    %c0_39 = arith.constant 0 : index
    %53 = vector.load %arg5[%c0_38, %c0_39] : memref<8x1xf32, #tpu.memory_space<vmem>>, vector<8x1xf32>
    %c0_40 = arith.constant 0 : index
    %c0_41 = arith.constant 0 : index
    %54 = vector.load %arg6[%c0_40, %c0_41] : memref<8x1xf32, #tpu.memory_space<vmem>>, vector<8x1xf32>
    %cst_42 = arith.constant dense<0.000000e+00> : vector<8xf32>
    %55 = vector.multi_reduction <add>, %52, %cst_42 [1] : vector<8x16xf32> to vector<8xf32>
    %56 = vector.shape_cast %55 : vector<8xf32> to vector<8x1xf32>
    %57 = arith.mulf %52, %52 : vector<8x16xf32>
    %cst_43 = arith.constant dense<0.000000e+00> : vector<8xf32>
    %58 = vector.multi_reduction <add>, %57, %cst_43 [1] : vector<8x16xf32> to vector<8xf32>
    %59 = vector.shape_cast %58 : vector<8xf32> to vector<8x1xf32>
    %cst_44 = arith.constant 6.250000e-02 : f32
    %60 = vector.broadcast %cst_44 : f32 to vector<8x1xf32>
    %61 = arith.mulf %56, %60 : vector<8x1xf32>
    %cst_45 = arith.constant 6.250000e-02 : f32
    %62 = vector.broadcast %cst_45 : f32 to vector<8x1xf32>
    %63 = arith.mulf %59, %62 : vector<8x1xf32>
    %64 = arith.mulf %61, %61 : vector<8x1xf32>
    %65 = arith.subf %63, %64 : vector<8x1xf32>
    %cst_46 = arith.constant 0.000000e+00 : f32
    %66 = vector.broadcast %cst_46 : f32 to vector<8x1xf32>
    %67 = arith.maximumf %65, %66 : vector<8x1xf32>
    %68 = vector.broadcast %61 : vector<8x1xf32> to vector<8x16xf32>
    %69 = arith.subf %52, %68 : vector<8x16xf32>
    %cst_47 = arith.constant 9.99999974E-6 : f32
    %70 = vector.broadcast %cst_47 : f32 to vector<8x1xf32>
    %71 = arith.addf %67, %70 : vector<8x1xf32>
    %72 = math.rsqrt %71 : vector<8x1xf32>
    %73 = arith.mulf %72, %53 : vector<8x1xf32>
    %74 = vector.broadcast %73 : vector<8x1xf32> to vector<8x16xf32>
    %75 = arith.mulf %69, %74 : vector<8x16xf32>
    %76 = vector.broadcast %54 : vector<8x1xf32> to vector<8x16xf32>
    %77 = arith.addf %75, %76 : vector<8x16xf32>
    %c0_48 = arith.constant 0 : index
    %c0_49 = arith.constant 0 : index
    %78 = vector.load %arg8[%c0_48, %c0_49] : memref<8x4xf32, #tpu.memory_space<vmem>>, vector<8x4xf32>
    %79 = vector.extract_strided_slice %0 {offsets = [0, 0], sizes = [4, 16], strides = [1, 1]} : vector<12x16xf32> to vector<4x16xf32>
    %cst_50 = arith.constant dense<0.000000e+00> : vector<8x16xf32>
    %80 = tpu.matmul %78, %79, %cst_50 {dimension_numbers = #tpu.dot_dimension_numbers<[1], [0], [0], [1], [0, 0, 1, 1], [], []>} : vector<8x4xf32>, vector<4x16xf32>, vector<8x16xf32> -> vector<8x16xf32>
    %c0_51 = arith.constant 0 : index
    %c0_52 = arith.constant 0 : index
    %81 = vector.load %arg9[%c0_51, %c0_52] : memref<8x1xf32, #tpu.memory_space<vmem>>, vector<8x1xf32>
    %c0_53 = arith.constant 0 : index
    %c0_54 = arith.constant 0 : index
    %82 = vector.load %arg10[%c0_53, %c0_54] : memref<8x1xf32, #tpu.memory_space<vmem>>, vector<8x1xf32>
    %cst_55 = arith.constant dense<0.000000e+00> : vector<8xf32>
    %83 = vector.multi_reduction <add>, %80, %cst_55 [1] : vector<8x16xf32> to vector<8xf32>
    %84 = vector.shape_cast %83 : vector<8xf32> to vector<8x1xf32>
    %85 = arith.mulf %80, %80 : vector<8x16xf32>
    %cst_56 = arith.constant dense<0.000000e+00> : vector<8xf32>
    %86 = vector.multi_reduction <add>, %85, %cst_56 [1] : vector<8x16xf32> to vector<8xf32>
    %87 = vector.shape_cast %86 : vector<8xf32> to vector<8x1xf32>
    %cst_57 = arith.constant 6.250000e-02 : f32
    %88 = vector.broadcast %cst_57 : f32 to vector<8x1xf32>
    %89 = arith.mulf %84, %88 : vector<8x1xf32>
    %cst_58 = arith.constant 6.250000e-02 : f32
    %90 = vector.broadcast %cst_58 : f32 to vector<8x1xf32>
    %91 = arith.mulf %87, %90 : vector<8x1xf32>
    %92 = arith.mulf %89, %89 : vector<8x1xf32>
    %93 = arith.subf %91, %92 : vector<8x1xf32>
    %cst_59 = arith.constant 0.000000e+00 : f32
    %94 = vector.broadcast %cst_59 : f32 to vector<8x1xf32>
    %95 = arith.maximumf %93, %94 : vector<8x1xf32>
    %96 = vector.broadcast %89 : vector<8x1xf32> to vector<8x16xf32>
    %97 = arith.subf %80, %96 : vector<8x16xf32>
    %cst_60 = arith.constant 9.99999974E-6 : f32
    %98 = vector.broadcast %cst_60 : f32 to vector<8x1xf32>
    %99 = arith.addf %95, %98 : vector<8x1xf32>
    %100 = math.rsqrt %99 : vector<8x1xf32>
    %101 = arith.mulf %100, %81 : vector<8x1xf32>
    %102 = vector.broadcast %101 : vector<8x1xf32> to vector<8x16xf32>
    %103 = arith.mulf %97, %102 : vector<8x16xf32>
    %104 = vector.broadcast %82 : vector<8x1xf32> to vector<8x16xf32>
    %105 = arith.addf %103, %104 : vector<8x16xf32>
    %106 = arith.addf %77, %105 : vector<8x16xf32>
    %cst_61 = arith.constant 0.000000e+00 : f32
    %107 = vector.broadcast %cst_61 : f32 to vector<8x16xf32>
    %108 = arith.maximumf %106, %107 : vector<8x16xf32>
    %c0_62 = arith.constant 0 : index
    %c0_63 = arith.constant 0 : index
    %109 = vector.load %arg11[%c0_62, %c0_63] : memref<8x16xf32, #tpu.memory_space<vmem>>, vector<8x16xf32>
    tpu.vector_store %arg11[%c0_62, %c0_63], %108 {strides = array<i32>} : memref<8x16xf32, #tpu.memory_space<vmem>>, vector<8x16xf32>,
    return
  }
}

</mosaic_0001>

<llo_original>
// kernel: tpu_custom_call.1
$region0: #{tpu_custom_call.1}
  #allocation0 [shape = 'u32[]', space=smem, size = 0x4, offset = 0x4, fixed_abs, tag = 'smem constant byte address 0x4 - core index']
  #allocation1 [shape = 'u32[144,128]{1,0:T(1,128)}', space=vmem, size = 0x12000, scoped, tag = 'internal scratch']
  #allocation2 [shape = 'f32[8,18]{1,0:T(8,128)}', space=vmem, size = 0x1000, scoped, tag = 'scratch operand']
  %s0 = inlined_call_operand.vmem [shape: f32[12,16], index: 0, kind: input, shape index: {}]
  %s1 = inlined_call_operand.vmem [shape: f32[8,12], index: 1, kind: input, shape index: {}]
  %s2 = inlined_call_operand.vmem [shape: f32[8,1], index: 2, kind: input, shape index: {}]
  %s3 = inlined_call_operand.vmem [shape: f32[8,1], index: 3, kind: input, shape index: {}]
  %s4 = inlined_call_operand.vmem [shape: f32[3,8,8], index: 4, kind: input, shape index: {}]
  %s5 = inlined_call_operand.vmem [shape: f32[8,1], index: 5, kind: input, shape index: {}]
  %s6 = inlined_call_operand.vmem [shape: f32[8,1], index: 6, kind: input, shape index: {}]
  %s7 = inlined_call_operand.vmem [shape: f32[2,16], index: 7, kind: input, shape index: {}]
  %s8 = inlined_call_operand.vmem [shape: f32[8,4], index: 8, kind: input, shape index: {}]
  %s9 = inlined_call_operand.vmem [shape: f32[8,1], index: 9, kind: input, shape index: {}]
  %s10 = inlined_call_operand.vmem [shape: f32[8,1], index: 10, kind: input, shape index: {}]
  %s11 = inlined_call_operand.hbm [shape: f32[8,16], index: 11, kind: output, shape index: {}]
  %s12 = sld [smem:[#allocation0]]
  $region54: #{tpu_custom_call.1} parent=0
    _
  %s14 = ssub.s32 1, %s12
  %s15 = scalar_select 0, %s14, %s12
  $region1: #{tpu_custom_call.1} parent=0
    #allocation3 [shape = 'u8[4096]{0}', space=vmem, size = 0x1000, scoped, tag = 'output window, operand 0, single buffered']
    #allocation4 [shape = 's32[1]{0}', space=sflag, size = 0x4, scoped, tag = 'scoped memory for tpu_custom_call.1']
    %16 = vsyncpa [#allocation4], 0
    // Predicated region
    $region2: #{tpu_custom_call.1} parent=1 // pred_check
      _
    $region3: #{tpu_custom_call.1} parent=1 // pred_check_branch
      %18 = sbr.rel (0) target = $region5
    $region4: #{tpu_custom_call.1} parent=1 // pred_region
      _
    $region5: #{tpu_custom_call.1} parent=1 // pred_fallthru
      _
    // Predicated region
    $region6: #{tpu_custom_call.1} parent=1 // pred_check
      _
    $region7: #{tpu_custom_call.1} parent=1 // pred_check_branch
      %20 = sbr.rel (0) target = $region9
    $region8: #{tpu_custom_call.1} parent=1 // pred_region
      _
    $region9: #{tpu_custom_call.1} parent=1 // pred_fallthru
      _
    // Predicated region
    $region10: #{tpu_custom_call.1} parent=1 // pred_check
      _
    $region11: #{tpu_custom_call.1} parent=1 // pred_check_branch
      %22 = sbr.rel (0) target = $region13
    $region12: #{tpu_custom_call.1} parent=1 // pred_region
      _
    $region13: #{tpu_custom_call.1} parent=1 // pred_fallthru
      _
    // Predicated region
    $region14: #{tpu_custom_call.1} parent=1 // pred_check
      _
    $region15: #{tpu_custom_call.1} parent=1 // pred_check_branch
      %24 = sbr.rel (0) target = $region17
    $region16: #{tpu_custom_call.1} parent=1 // pred_region
      _
    $region17: #{tpu_custom_call.1} parent=1 // pred_fallthru
      _
    // Predicated region
    $region18: #{tpu_custom_call.1} parent=1 // pred_check
      _
    $region19: #{tpu_custom_call.1} parent=1 // pred_check_branch
      %26 = sbr.rel (0) target = $region21
    $region20: #{tpu_custom_call.1} parent=1 // pred_region
      _
    $region21: #{tpu_custom_call.1} parent=1 // pred_fallthru
      _
    // Predicated region
    $region22: #{tpu_custom_call.1} parent=1 // pred_check
      _
    $region23: #{tpu_custom_call.1} parent=1 // pred_check_branch
      %28 = sbr.rel (0) target = $region25
    $region24: #{tpu_custom_call.1} parent=1 // pred_region
      _
    $region25: #{tpu_custom_call.1} parent=1 // pred_fallthru
      _
    // Predicated region
    $region26: #{tpu_custom_call.1} parent=1 // pred_check
      _
    $region27: #{tpu_custom_call.1} parent=1 // pred_check_branch
      %30 = sbr.rel (0) target = $region29
    $region28: #{tpu_custom_call.1} parent=1 // pred_region
      _
    $region29: #{tpu_custom_call.1} parent=1 // pred_fallthru
      _
    // Predicated region
    $region30: #{tpu_custom_call.1} parent=1 // pred_check
      _
    $region31: #{tpu_custom_call.1} parent=1 // pred_check_branch
      %32 = sbr.rel (0) target = $region33
    $region32: #{tpu_custom_call.1} parent=1 // pred_region
      _
    $region33: #{tpu_custom_call.1} parent=1 // pred_fallthru
      _
    // Predicated region
    $region34: #{tpu_custom_call.1} parent=1 // pred_check
      _
    $region35: #{tpu_custom_call.1} parent=1 // pred_check_branch
      %34 = sbr.rel (0) target = $region37
    $region36: #{tpu_custom_call.1} parent=1 // pred_region
      _
    $region37: #{tpu_custom_call.1} parent=1 // pred_fallthru
      _
    // Predicated region
    $region38: #{tpu_custom_call.1} parent=1 // pred_check
      _
    $region39: #{tpu_custom_call.1} parent=1 // pred_check_branch
      %36 = sbr.rel (0) target = $region41
    $region40: #{tpu_custom_call.1} parent=1 // pred_region
      _
    $region41: #{tpu_custom_call.1} parent=1 // pred_fallthru
      _
    // Predicated region
    $region42: #{tpu_custom_call.1} parent=1 // pred_check
      _
    $region43: #{tpu_custom_call.1} parent=1 // pred_check_branch
      %38 = sbr.rel (0) target = $region45
    $region44: #{tpu_custom_call.1} parent=1 // pred_region
      _
    $region45: #{tpu_custom_call.1} parent=1 // pred_fallthru
      _
    %v39 = vld [vmem:[%s0] sm:$0xff]
    %v40 = vld [vmem:[%s0 + $0x8] sm:$0xf]
    %v41 = vld [vmem:[%s1] sm:$0xff]
    %vm42 = vcmask 97280
    %v44 = vsel %vm42, %v41, 0
    %vm46 = vcmask 1043456
    %v48 = vsel %vm46, %v40, 0
    %50 = vmatprep.subr.mxu0 0.0
    %51 = vmatpush1.msra.mxu0 0.0
    %52 = vmatprep.subr.mxu0 0.0
    %53 = vmatpush1.msra.mxu0 0.0
    %54 = vmatprep.subr.mxu0 0.0
    %55 = vmatpush1.msra.mxu0 0.0
    %56 = vmatprep.subr.mxu0 0.0
    %57 = vmatpush1.msra.mxu0 0.0
    %58 = vmatprep.subr.mxu0 0.0
    %59 = vmatpush1.msra.mxu0 0.0
    %60 = vmatprep.subr.mxu0 0.0
    %61 = vmatpush1.msra.mxu0 0.0
    %62 = vmatprep.subr.mxu0 0.0
    %63 = vmatpush1.msra.mxu0 0.0
    %64 = vmatprep.subr.mxu0 0.0
    %65 = vmatpush1.msra.mxu0 0.0
    %66 = vmatprep.subr.mxu0 0.0
    %67 = vmatpush1.msra.mxu0 0.0
    %68 = vmatprep.subr.mxu0 0.0
    %69 = vmatpush1.msra.mxu0 0.0
    %70 = vmatprep.subr.mxu0 0.0
    %71 = vmatpush1.msra.mxu0 0.0
    %72 = vmatprep.subr.mxu0 0.0
    %73 = vmatpush1.msra.mxu0 0.0
    %74 = vmatprep.subr.mxu0 0.0
    %75 = vmatpush1.msra.mxu0 0.0
    %76 = vmatprep.subr.mxu0 0.0
    %77 = vmatpush1.msra.mxu0 0.0
    %78 = vmatprep.subr.mxu0 0.0
    %79 = vmatpush1.msra.mxu0 %v48
    %80 = vmatprep.subr.mxu0 0.0
    %81 = vmatpush1.msra.mxu0 %v39
    %82 = vmatprep.subr.mxu0 0.0
    %83 = vmatpush2.msra.mxu0 0.0
    %84 = vmatprep.subr.mxu0 0.0
    %85 = vmatpush2.msra.mxu0 0.0
    %86 = vmatprep.subr.mxu0 0.0
    %87 = vmatpush2.msra.mxu0 0.0
    %88 = vmatprep.subr.mxu0 0.0
    %89 = vmatpush2.msra.mxu0 0.0
    %90 = vmatprep.subr.mxu0 0.0
    %91 = vmatpush2.msra.mxu0 0.0
    %92 = vmatprep.subr.mxu0 0.0
    %93 = vmatpush2.msra.mxu0 0.0
    %94 = vmatprep.subr.mxu0 0.0
    %95 = vmatpush2.msra.mxu0 0.0
    %96 = vmatprep.subr.mxu0 0.0
    %97 = vmatpush2.msra.mxu0 0.0
    %98 = vmatprep.subr.mxu0 0.0
    %99 = vmatpush2.msra.mxu0 0.0
    %100 = vmatprep.subr.mxu0 0.0
    %101 = vmatpush2.msra.mxu0 0.0
    %102 = vmatprep.subr.mxu0 0.0
    %103 = vmatpush2.msra.mxu0 0.0
    %104 = vmatprep.subr.mxu0 0.0
    %105 = vmatpush2.msra.mxu0 0.0
    %106 = vmatprep.subr.mxu0 0.0
    %107 = vmatpush2.msra.mxu0 0.0
    %108 = vmatprep.subr.mxu0 0.0
    %109 = vmatpush2.msra.mxu0 0.0
    %110 = vmatprep.subr.mxu0 0.0
    %111 = vmatpush2.msra.mxu0 0.0
    %112 = vmatprep.subr.mxu0 0.0
    %113 = vmatpush2.msra.mxu0 0.0
    %114 = vmatprep.mubr.f32.mxu0 0.0
    %115 = vmatmul.mubr.f32.gmra.mxu0 %v44
    %v116 = vpop.f32.mrf.mxu0
    %v117 = vadd.f32 0.0, %v116
    %v118 = vpop.f32.mrf.mxu0
    %119 = vdwg.mxu0
    %v120 = vld [vmem:[%s2] sm:$0xff]
    %v121 = vld [vmem:[%s3] sm:$0xff]
    %vm122 = vcmask 130048
    %v123 = vsel %vm122, %v117, 0.0
    %124 = vadd.xlane.f32.xlu0 %v123
    %v125 = vpop.xlane.xlu0 %124
    %v126 = vmul.f32 %v117, %v117
    %v127 = vsel %vm122, %v126, 0.0
    %128 = vadd.xlane.f32.xlu0 %v127
    %v129 = vpop.xlane.xlu0 %128
    %v130 = vmul.f32 %v125, 0.0625
    %v131 = vmul.f32 %v129, 0.0625
    %v132 = vmul.f32 %v130, %v130
    %v133 = vsub.f32 %v131, %v132
    %v134 = vmax.f32 %v133, 0.0
    %v135 = vsub.f32 %v117, %v130
    %v136 = vadd.f32 %v134, 1e-05
    %v137 = vrsqrt.pop %v136
    %v138 = vmul.f32 %v137, %v120
    %140 = vset.pattern.permute.xlu0 0
    %141 = vperm.xlu0 %140, %v138
    %v142 = vpop.permute.xlu0 %141
    %v144 = vmul.f32 %v135, %v142
    %146 = vset.pattern.permute.xlu0 0
    %147 = vperm.xlu0 %146, %v121
    %v148 = vpop.permute.xlu0 %147
    %v150 = vadd.f32 %v144, %v148
    %v151 = vmax.f32 %v150, 0.0
    %153 = vrot.lane.b32.xlu0 %v151, 1
    %v154 = vpop.permute.xlu0 %153
    %vm156 = vcmask 138248
    %157 = vst.msk [vmem:[#allocation2] sm:$0xff] %vm156, %v154
    %vm158 = vcmask 7168
    %159 = vst.msk [vmem:[#allocation2] sm:$0xff] %vm158, 0.0
    %vm160 = vcmask 146568
    %161 = vst.msk [vmem:[#allocation2] sm:$0xff] %vm160, 0.0
    %v162 = vld [vmem:[#allocation2] sm:$0xff]
    %v163 = vld [vmem:[%s7] sm:$0x1]
    %v164 = vlaneseq
    %v165 = vshrl.u32 %v164, 7
    %v166 = vsub.s32 0, %v165
    %v167 = vrot.slane %v163, %v166
    %v168 = vmul.f32 %v162, %v167
    %v169 = vld [vmem:[%s7 + $0x1] sm:$0x1]
    %v170 = vlaneseq
    %v171 = vshrl.u32 %v170, 7
    %v172 = vsub.s32 0, %v171
    %v173 = vrot.slane %v169, %v172
    %175 = vrot.lane.b32.xlu0 %v173, 2
    %v176 = vpop.permute.xlu0 %175
    %v178 = vmul.f32 %v162, %v176
    %s179 = scalar_lea.vmem %s4, 8
    %v180 = vld [vmem:[%s179] sm:$0xff]
    %v181 = vld [vmem:[%s4] sm:$0xff]
    %vm182 = vcmask 64512
    %v184 = vsel %vm182, %v181, 0
    %186 = vmatprep.subr.mxu0 0.0
    %187 = vmatpush1.msra.mxu0 0.0
    %188 = vmatprep.subr.mxu0 0.0
    %189 = vmatpush1.msra.mxu0 0.0
    %190 = vmatprep.subr.mxu0 0.0
    %191 = vmatpush1.msra.mxu0 0.0
    %192 = vmatprep.subr.mxu0 0.0
    %193 = vmatpush1.msra.mxu0 0.0
    %194 = vmatprep.subr.mxu0 0.0
    %195 = vmatpush1.msra.mxu0 0.0
    %196 = vmatprep.subr.mxu0 0.0
    %197 = vmatpush1.msra.mxu0 0.0
    %198 = vmatprep.subr.mxu0 0.0
    %199 = vmatpush1.msra.mxu0 0.0
    %200 = vmatprep.subr.mxu0 0.0
    %201 = vmatpush1.msra.mxu0 0.0
    %202 = vmatprep.subr.mxu0 0.0
    %203 = vmatpush1.msra.mxu0 0.0
    %204 = vmatprep.subr.mxu0 0.0
    %205 = vmatpush1.msra.mxu0 0.0
    %206 = vmatprep.subr.mxu0 0.0
    %207 = vmatpush1.msra.mxu0 0.0
    %208 = vmatprep.subr.mxu0 0.0
    %209 = vmatpush1.msra.mxu0 0.0
    %210 = vmatprep.subr.mxu0 0.0
    %211 = vmatpush1.msra.mxu0 0.0
    %212 = vmatprep.subr.mxu0 0.0
    %213 = vmatpush1.msra.mxu0 0.0
    %214 = vmatprep.subr.mxu0 0.0
    %215 = vmatpush1.msra.mxu0 0.0
    %216 = vmatprep.subr.mxu0 0.0
    %217 = vmatpush1.msra.mxu0 %v168
    %218 = vmatprep.subr.mxu0 0.0
    %219 = vmatpush2.msra.mxu0 0.0
    %220 = vmatprep.subr.mxu0 0.0
    %221 = vmatpush2.msra.mxu0 0.0
    %222 = vmatprep.subr.mxu0 0.0
    %223 = vmatpush2.msra.mxu0 0.0
    %224 = vmatprep.subr.mxu0 0.0
    %225 = vmatpush2.msra.mxu0 0.0
    %226 = vmatprep.subr.mxu0 0.0
    %227 = vmatpush2.msra.mxu0 0.0
    %228 = vmatprep.subr.mxu0 0.0
    %229 = vmatpush2.msra.mxu0 0.0
    %230 = vmatprep.subr.mxu0 0.0
    %231 = vmatpush2.msra.mxu0 0.0
    %232 = vmatprep.subr.mxu0 0.0
    %233 = vmatpush2.msra.mxu0 0.0
    %234 = vmatprep.subr.mxu0 0.0
    %235 = vmatpush2.msra.mxu0 0.0
    %236 = vmatprep.subr.mxu0 0.0
    %237 = vmatpush2.msra.mxu0 0.0
    %238 = vmatprep.subr.mxu0 0.0
    %239 = vmatpush2.msra.mxu0 0.0
    %240 = vmatprep.subr.mxu0 0.0
    %241 = vmatpush2.msra.mxu0 0.0
    %242 = vmatprep.subr.mxu0 0.0
    %243 = vmatpush2.msra.mxu0 0.0
    %244 = vmatprep.subr.mxu0 0.0
    %245 = vmatpush2.msra.mxu0 0.0
    %246 = vmatprep.subr.mxu0 0.0
    %247 = vmatpush2.msra.mxu0 0.0
    %248 = vmatprep.subr.mxu0 0.0
    %249 = vmatpush2.msra.mxu0 0.0
    %250 = vmatprep.mubr.f32.mxu0 0.0
    %251 = vmatmul.mubr.f32.gmra.mxu0 %v184
    %v252 = vpop.f32.mrf.mxu0
    %v253 = vadd.f32 0.0, %v252
    %v254 = vpop.f32.mrf.mxu0
    %255 = vdwg.mxu0
    %v257 = vsel %vm182, %v180, 0
    %259 = vmatprep.subr.mxu0 0.0
    %260 = vmatpush1.msra.mxu0 0.0
    %261 = vmatprep.subr.mxu0 0.0
    %262 = vmatpush1.msra.mxu0 0.0
    %263 = vmatprep.subr.mxu0 0.0
    %264 = vmatpush1.msra.mxu0 0.0
    %265 = vmatprep.subr.mxu0 0.0
    %266 = vmatpush1.msra.mxu0 0.0
    %267 = vmatprep.subr.mxu0 0.0
    %268 = vmatpush1.msra.mxu0 0.0
    %269 = vmatprep.subr.mxu0 0.0
    %270 = vmatpush1.msra.mxu0 0.0
    %271 = vmatprep.subr.mxu0 0.0
    %272 = vmatpush1.msra.mxu0 0.0
    %273 = vmatprep.subr.mxu0 0.0
    %274 = vmatpush1.msra.mxu0 0.0
    %275 = vmatprep.subr.mxu0 0.0
    %276 = vmatpush1.msra.mxu0 0.0
    %277 = vmatprep.subr.mxu0 0.0
    %278 = vmatpush1.msra.mxu0 0.0
    %279 = vmatprep.subr.mxu0 0.0
    %280 = vmatpush1.msra.mxu0 0.0
    %281 = vmatprep.subr.mxu0 0.0
    %282 = vmatpush1.msra.mxu0 0.0
    %283 = vmatprep.subr.mxu0 0.0
    %284 = vmatpush1.msra.mxu0 0.0
    %285 = vmatprep.subr.mxu0 0.0
    %286 = vmatpush1.msra.mxu0 0.0
    %287 = vmatprep.subr.mxu0 0.0
    %288 = vmatpush1.msra.mxu0 0.0
    %289 = vmatprep.subr.mxu0 0.0
    %290 = vmatpush1.msra.mxu0 %v151
    %291 = vmatprep.subr.mxu0 0.0
    %292 = vmatpush2.msra.mxu0 0.0
    %293 = vmatprep.subr.mxu0 0.0
    %294 = vmatpush2.msra.mxu0 0.0
    %295 = vmatprep.subr.mxu0 0.0
    %296 = vmatpush2.msra.mxu0 0.0
    %297 = vmatprep.subr.mxu0 0.0
    %298 = vmatpush2.msra.mxu0 0.0
    %299 = vmatprep.subr.mxu0 0.0
    %300 = vmatpush2.msra.mxu0 0.0
    %301 = vmatprep.subr.mxu0 0.0
    %302 = vmatpush2.msra.mxu0 0.0
    %303 = vmatprep.subr.mxu0 0.0
    %304 = vmatpush2.msra.mxu0 0.0
    %305 = vmatprep.subr.mxu0 0.0
    %306 = vmatpush2.msra.mxu0 0.0
    %307 = vmatprep.subr.mxu0 0.0
    %308 = vmatpush2.msra.mxu0 0.0
    %309 = vmatprep.subr.mxu0 0.0
    %310 = vmatpush2.msra.mxu0 0.0
    %311 = vmatprep.subr.mxu0 0.0
    %312 = vmatpush2.msra.mxu0 0.0
    %313 = vmatprep.subr.mxu0 0.0
    %314 = vmatpush2.msra.mxu0 0.0
    %315 = vmatprep.subr.mxu0 0.0
    %316 = vmatpush2.msra.mxu0 0.0
    %317 = vmatprep.subr.mxu0 0.0
    %318 = vmatpush2.msra.mxu0 0.0
    %319 = vmatprep.subr.mxu0 0.0
    %320 = vmatpush2.msra.mxu0 0.0
    %321 = vmatprep.subr.mxu0 0.0
    %322 = vmatpush2.msra.mxu0 0.0
    %323 = vmatprep.mubr.f32.mxu0 0.0
    %324 = vmatmul.mubr.f32.gmra.mxu0 %v257
    %v325 = vpop.f32.mrf.mxu0
    %v326 = vadd.f32 %v253, %v325
    %v327 = vpop.f32.mrf.mxu0
    %328 = vdwg.mxu0
    %s329 = scalar_lea.vmem %s4, 16
    %v330 = vld [vmem:[%s329] sm:$0xff]
    %332 = vrot.lane.b32.xlu0 %v178, 126
    %v333 = vpop.permute.xlu0 %332
    %v336 = vsel %vm182, %v330, 0
    %338 = vmatprep.subr.mxu0 0.0
    %339 = vmatpush1.msra.mxu0 0.0
    %340 = vmatprep.subr.mxu0 0.0
    %341 = vmatpush1.msra.mxu0 0.0
    %342 = vmatprep.subr.mxu0 0.0
    %343 = vmatpush1.msra.mxu0 0.0
    %344 = vmatprep.subr.mxu0 0.0
    %345 = vmatpush1.msra.mxu0 0.0
    %346 = vmatprep.subr.mxu0 0.0
    %347 = vmatpush1.msra.mxu0 0.0
    %348 = vmatprep.subr.mxu0 0.0
    %349 = vmatpush1.msra.mxu0 0.0
    %350 = vmatprep.subr.mxu0 0.0
    %351 = vmatpush1.msra.mxu0 0.0
    %352 = vmatprep.subr.mxu0 0.0
    %353 = vmatpush1.msra.mxu0 0.0
    %354 = vmatprep.subr.mxu0 0.0
    %355 = vmatpush1.msra.mxu0 0.0
    %356 = vmatprep.subr.mxu0 0.0
    %357 = vmatpush1.msra.mxu0 0.0
    %358 = vmatprep.subr.mxu0 0.0
    %359 = vmatpush1.msra.mxu0 0.0
    %360 = vmatprep.subr.mxu0 0.0
    %361 = vmatpush1.msra.mxu0 0.0
    %362 = vmatprep.subr.mxu0 0.0
    %363 = vmatpush1.msra.mxu0 0.0
    %364 = vmatprep.subr.mxu0 0.0
    %365 = vmatpush1.msra.mxu0 0.0
    %366 = vmatprep.subr.mxu0 0.0
    %367 = vmatpush1.msra.mxu0 0.0
    %368 = vmatprep.subr.mxu0 0.0
    %369 = vmatpush1.msra.mxu0 %v333
    %370 = vmatprep.subr.mxu0 0.0
    %371 = vmatpush2.msra.mxu0 0.0
    %372 = vmatprep.subr.mxu0 0.0
    %373 = vmatpush2.msra.mxu0 0.0
    %374 = vmatprep.subr.mxu0 0.0
    %375 = vmatpush2.msra.mxu0 0.0
    %376 = vmatprep.subr.mxu0 0.0
    %377 = vmatpush2.msra.mxu0 0.0
    %378 = vmatprep.subr.mxu0 0.0
    %379 = vmatpush2.msra.mxu0 0.0
    %380 = vmatprep.subr.mxu0 0.0
    %381 = vmatpush2.msra.mxu0 0.0
    %382 = vmatprep.subr.mxu0 0.0
    %383 = vmatpush2.msra.mxu0 0.0
    %384 = vmatprep.subr.mxu0 0.0
    %385 = vmatpush2.msra.mxu0 0.0
    %386 = vmatprep.subr.mxu0 0.0
    %387 = vmatpush2.msra.mxu0 0.0
    %388 = vmatprep.subr.mxu0 0.0
    %389 = vmatpush2.msra.mxu0 0.0
    %390 = vmatprep.subr.mxu0 0.0
    %391 = vmatpush2.msra.mxu0 0.0
    %392 = vmatprep.subr.mxu0 0.0
    %393 = vmatpush2.msra.mxu0 0.0
    %394 = vmatprep.subr.mxu0 0.0
    %395 = vmatpush2.msra.mxu0 0.0
    %396 = vmatprep.subr.mxu0 0.0
    %397 = vmatpush2.msra.mxu0 0.0
    %398 = vmatprep.subr.mxu0 0.0
    %399 = vmatpush2.msra.mxu0 0.0
    %400 = vmatprep.subr.mxu0 0.0
    %401 = vmatpush2.msra.mxu0 0.0
    %402 = vmatprep.mubr.f32.mxu0 0.0
    %403 = vmatmul.mubr.f32.gmra.mxu0 %v336
    %v404 = vpop.f32.mrf.mxu0
    %v405 = vadd.f32 0.0, %v404
    %v406 = vpop.f32.mrf.mxu0
    %407 = vdwg.mxu0
    %v408 = vadd.f32 %v326, %v405
    %v409 = vld [vmem:[%s5] sm:$0xff]
    %v410 = vld [vmem:[%s6] sm:$0xff]
    %v411 = vsel %vm122, %v408, 0.0
    %412 = vadd.xlane.f32.xlu0 %v411
    %v413 = vpop.xlane.xlu0 %412
    %v414 = vmul.f32 %v408, %v408
    %v415 = vsel %vm122, %v414, 0.0
    %416 = vadd.xlane.f32.xlu0 %v415
    %v417 = vpop.xlane.xlu0 %416
    %v418 = vmul.f32 %v413, 0.0625
    %v419 = vmul.f32 %v417, 0.0625
    %v420 = vmul.f32 %v418, %v418
    %v421 = vsub.f32 %v419, %v420
    %v422 = vmax.f32 %v421, 0.0
    %v423 = vsub.f32 %v408, %v418
    %v424 = vadd.f32 %v422, 1e-05
    %v425 = vrsqrt.pop %v424
    %v426 = vmul.f32 %v425, %v409
    %428 = vset.pattern.permute.xlu0 0
    %429 = vperm.xlu0 %428, %v426
    %v430 = vpop.permute.xlu0 %429
    %v432 = vmul.f32 %v423, %v430
    %434 = vset.pattern.permute.xlu0 0
    %435 = vperm.xlu0 %434, %v410
    %v436 = vpop.permute.xlu0 %435
    %v438 = vadd.f32 %v432, %v436
    %v439 = vld [vmem:[%s8] sm:$0xff]
    %vm440 = vcmask 31744
    %v442 = vsel %vm440, %v439, 0
    %v445 = vsel %vm46, %v39, 0
    %447 = vmatprep.subr.mxu0 0.0
    %448 = vmatpush1.msra.mxu0 0.0
    %449 = vmatprep.subr.mxu0 0.0
    %450 = vmatpush1.msra.mxu0 0.0
    %451 = vmatprep.subr.mxu0 0.0
    %452 = vmatpush1.msra.mxu0 0.0
    %453 = vmatprep.subr.mxu0 0.0
    %454 = vmatpush1.msra.mxu0 0.0
    %455 = vmatprep.subr.mxu0 0.0
    %456 = vmatpush1.msra.mxu0 0.0
    %457 = vmatprep.subr.mxu0 0.0
    %458 = vmatpush1.msra.mxu0 0.0
    %459 = vmatprep.subr.mxu0 0.0
    %460 = vmatpush1.msra.mxu0 0.0
    %461 = vmatprep.subr.mxu0 0.0
    %462 = vmatpush1.msra.mxu0 0.0
    %463 = vmatprep.subr.mxu0 0.0
    %464 = vmatpush1.msra.mxu0 0.0
    %465 = vmatprep.subr.mxu0 0.0
    %466 = vmatpush1.msra.mxu0 0.0
    %467 = vmatprep.subr.mxu0 0.0
    %468 = vmatpush1.msra.mxu0 0.0
    %469 = vmatprep.subr.mxu0 0.0
    %470 = vmatpush1.msra.mxu0 0.0
    %471 = vmatprep.subr.mxu0 0.0
    %472 = vmatpush1.msra.mxu0 0.0
    %473 = vmatprep.subr.mxu0 0.0
    %474 = vmatpush1.msra.mxu0 0.0
    %475 = vmatprep.subr.mxu0 0.0
    %476 = vmatpush1.msra.mxu0 0.0
    %477 = vmatprep.subr.mxu0 0.0
    %478 = vmatpush1.msra.mxu0 %v445
    %479 = vmatprep.subr.mxu0 0.0
    %480 = vmatpush2.msra.mxu0 0.0
    %481 = vmatprep.subr.mxu0 0.0
    %482 = vmatpush2.msra.mxu0 0.0
    %483 = vmatprep.subr.mxu0 0.0
    %484 = vmatpush2.msra.mxu0 0.0
    %485 = vmatprep.subr.mxu0 0.0
    %486 = vmatpush2.msra.mxu0 0.0
    %487 = vmatprep.subr.mxu0 0.0
    %488 = vmatpush2.msra.mxu0 0.0
    %489 = vmatprep.subr.mxu0 0.0
    %490 = vmatpush2.msra.mxu0 0.0
    %491 = vmatprep.subr.mxu0 0.0
    %492 = vmatpush2.msra.mxu0 0.0
    %493 = vmatprep.subr.mxu0 0.0
    %494 = vmatpush2.msra.mxu0 0.0
    %495 = vmatprep.subr.mxu0 0.0
    %496 = vmatpush2.msra.mxu0 0.0
    %497 = vmatprep.subr.mxu0 0.0
    %498 = vmatpush2.msra.mxu0 0.0
    %499 = vmatprep.subr.mxu0 0.0
    %500 = vmatpush2.msra.mxu0 0.0
    %501 = vmatprep.subr.mxu0 0.0
    %502 = vmatpush2.msra.mxu0 0.0
    %503 = vmatprep.subr.mxu0 0.0
    %504 = vmatpush2.msra.mxu0 0.0
    %505 = vmatprep.subr.mxu0 0.0
    %506 = vmatpush2.msra.mxu0 0.0
    %507 = vmatprep.subr.mxu0 0.0
    %508 = vmatpush2.msra.mxu0 0.0
    %509 = vmatprep.subr.mxu0 0.0
    %510 = vmatpush2.msra.mxu0 0.0
    %511 = vmatprep.mubr.f32.mxu0 0.0
    %512 = vmatmul.mubr.f32.gmra.mxu0 %v442
    %v513 = vpop.f32.mrf.mxu0
    %v514 = vadd.f32 0.0, %v513
    %v515 = vpop.f32.mrf.mxu0
    %516 = vdwg.mxu0
    %v517 = vld [vmem:[%s9] sm:$0xff]
    %v518 = vld [vmem:[%s10] sm:$0xff]
    %v519 = vsel %vm122, %v514, 0.0
    %520 = vadd.xlane.f32.xlu0 %v519
    %v521 = vpop.xlane.xlu0 %520
    %v522 = vmul.f32 %v514, %v514
    %v523 = vsel %vm122, %v522, 0.0
    %524 = vadd.xlane.f32.xlu0 %v523
    %v525 = vpop.xlane.xlu0 %524
    %v526 = vmul.f32 %v521, 0.0625
    %v527 = vmul.f32 %v525, 0.0625
    %v528 = vmul.f32 %v526, %v526
    %v529 = vsub.f32 %v527, %v528
    %v530 = vmax.f32 %v529, 0.0
    %v531 = vsub.f32 %v514, %v526
    %v532 = vadd.f32 %v530, 1e-05
    %v533 = vrsqrt.pop %v532
    %v534 = vmul.f32 %v533, %v517
    %536 = vset.pattern.permute.xlu0 0
    %537 = vperm.xlu0 %536, %v534
    %v538 = vpop.permute.xlu0 %537
    %v540 = vmul.f32 %v531, %v538
    %542 = vset.pattern.permute.xlu0 0
    %543 = vperm.xlu0 %542, %v518
    %v544 = vpop.permute.xlu0 %543
    %v546 = vadd.f32 %v540, %v544
    %v547 = vadd.f32 %v438, %v546
    %v548 = vmax.f32 %v547, 0.0
    %549 = vst.msk [vmem:[#allocation3] sm:$0xff] %vm122, %v548
    // Predicated region
    $region46: #{tpu_custom_call.1} parent=1 // pred_check
      _
    $region47: #{tpu_custom_call.1} parent=1 // pred_check_branch
      %551 = sbr.rel (0) target = $region49
    $region48: #{tpu_custom_call.1} parent=1 // pred_region
      %s553 = ssub.s32 128, 128
      %554 = vsyncadd [#allocation4], %s553
      %s556 = sshll.u32 [#allocation3], 4
      %s557 = int_to_ptr.vmem [resolvable:$true] %s556
      %559 = dma.vmem_to_hbm [thread:$0]  %s557, 128, %s11, [#allocation4]
    $region49: #{tpu_custom_call.1} parent=1 // pred_fallthru
      _
    // Predicated region
    $region50: #{tpu_custom_call.1} parent=1 // pred_check
      _
    $region51: #{tpu_custom_call.1} parent=1 // pred_check_branch
      %561 = sbr.rel (0) target = $region53
    $region52: #{tpu_custom_call.1} parent=1 // pred_region
      %562 = dma.done [#allocation4], 128
    $region53: #{tpu_custom_call.1} parent=1 // pred_fallthru
      _
    %563 = vsyncpa [#allocation4], 1

</llo_original>
